<compile_context>
chip_gen: v7x
topology: tpu7x:2x2x1
jax: 0.10.0
libtpu: 0.0.40
codegen_flags: <defaults>
</compile_context>

<pallas_src>
import functools

import numpy as np
import jax
import jax.numpy as jnp
from jax.experimental import pallas as pl
from jax.experimental.pallas import tpu as pltpu


def _round_up(x, m):
    return ((x + m - 1) // m) * m


def _cdiv(a, b):
    return -(-a // b)


@functools.lru_cache(maxsize=None)
def _get_weight(nfft, scaled, dtype_name):
    """Pre-transposed, contiguously packed [real ; imag] DFT*hann weights (F, nfft)."""
    n = np.arange(nfft)
    hann = 0.5 - 0.5 * np.cos(2.0 * np.pi * n / nfft)          # periodic ('fftbins') Hann
    ohm = np.exp(-2.0 * np.pi * 1j / nfft)
    w = np.power(ohm, np.outer(n, np.arange(nfft // 2 + 1))) * hann[:, None]
    if scaled:
        w = w * (2.0 / nfft)                                    # fold scale into weights
    nfreq = nfft // 2 + 1
    half = _round_up(nfreq, 8)            # imag rows start sublane-aligned
    f_total = 2 * half                    # contiguous real|imag packing (tight)
    wt = np.zeros((f_total, nfft), np.float32)
    wt[:nfreq, :] = w.real.T
    wt[half:half + nfreq, :] = w.imag.T
    return jnp.asarray(wt, dtype=jnp.dtype(dtype_name)), half, f_total


def _vmem_caps():
    """(working budget, compiler vmem limit) - generation aware (v7x: 64 MiB VMEM)."""
    try:
        cap = int(pltpu.get_tpu_info().vmem_capacity_bytes)
    except Exception:
        cap = 128 << 20
    budget = min(cap // 2, 40 << 20)
    limit = min(cap // 2, 64 << 20)
    return budget, limit


def _estimate_vmem(R, tile_t, tail, hop, nfft, f_total, half, in_bytes):
    w = f_total * nfft * in_bytes                      # resident weight, single-buffered
    a = 2 * hop * tile_t * in_bytes                    # double-buffered signal tile
    b = (2 * hop * tail * in_bytes) if R > 1 else 0    # double-buffered tail tile
    outs = 2 * 2 * half * tile_t * 4                   # real+imag f32, double-buffered
    slab = hop * (tile_t + tail) * in_bytes if R > 1 else 0
    ft = nfft * tile_t * in_bytes if R > 1 else 0
    acc = f_total * tile_t * 4                         # matmul result temp
    return w + a + b + outs + slab + ft + acc + (2 << 20)


def _make_kernel(R, tile_t, tail, hop, nfreq, half):
    """acc_t = W_t @ frames_t; writes (F, tile_t) real/imag rows (time on lanes)."""
    if R == 1:
        # hop == nfft (or pre-gathered frames_t): each frame is one column block.
        def kernel(a_ref, w_ref, real_ref, imag_ref):
            acc = jnp.dot(w_ref[...], a_ref[0], preferred_element_type=jnp.float32)
            real_ref[0] = acc[0:nfreq, :]
            imag_ref[0] = acc[half:half + nfreq, :]
        return kernel

    S = tile_t + tail

    def kernel(a_ref, b_ref, w_ref, real_ref, imag_ref, slab_ref, ft_ref):
        # Assemble the contiguous slab with two aligned stores (no concat copy).
        slab_ref[:, 0:tile_t] = a_ref[0]
        slab_ref[:, tile_t:S] = b_ref[0]
        slab = slab_ref[...]                          # (hop, tile_t + tail)
        # In-VMEM im2col: R lane-rolls (XLU, overlaps MXU) -> (nfft, tile_t) scratch.
        ft_ref[0:hop, :] = slab[:, 0:tile_t]
        for r in range(1, R):
            shifted = pltpu.roll(slab, shift=S - r, axis=1)   # == shift by -r
            ft_ref[r * hop:(r + 1) * hop, :] = shifted[:, 0:tile_t]
        # Single K = nfft matmul, f32 accumulation.
        acc = jnp.dot(w_ref[...], ft_ref[...], preferred_element_type=jnp.float32)
        real_ref[0] = acc[0:nfreq, :]
        imag_ref[0] = acc[half:half + nfreq, :]

    return kernel


def stft_pallas(x, nfft, hop_size=None, padding=True, pad_mode="reflect",
                scaled=False, tile_frames=512, compute_dtype=jnp.float32):
    """x: (bs, length) -> (real, imag), each (bs, nfft//2+1, T) float32."""
    assert x.ndim == 2
    hop = hop_size if hop_size else nfft // 4
    bs = x.shape[0]
    nfreq = nfft // 2 + 1
    compute_dtype = jnp.dtype(compute_dtype)
    in_bytes = compute_dtype.itemsize

    w_t, half, f_total = _get_weight(nfft, bool(scaled), compute_dtype.name)

    if padding:
        x = jnp.pad(x, ((0, 0), (nfft // 2, nfft // 2)), mode=pad_mode)
    padded_len = x.shape[1]
    num_frames = (padded_len - nfft) // hop + 1
    assert num_frames >= 1

    budget, vmem_limit = _vmem_caps()

    if nfft % hop == 0:
        # ---- in-kernel framing: the overlapping frames never hit HBM ----
        R = nfft // hop
        tail = _round_up(R - 1, 128) if R > 1 else 0      # lane-block aligned tail
        align = tail if tail else 128
        tile_t = _round_up(min(max(tile_frames, align), _round_up(num_frames, 8)), align)
        while (tile_t > align and
               _estimate_vmem(R, tile_t, tail, hop, nfft, f_total, half, in_bytes)
               > int(0.85 * budget)):
            tile_t = max(align, _round_up(tile_t // 2, align))
        num_tiles = _cdiv(num_frames, tile_t)
        rows_pad = num_tiles * tile_t + tail
        target = rows_pad * hop
        if target > padded_len:
            x = jnp.pad(x, ((0, 0), (0, target - padded_len)))
        elif target < padded_len:
            x = x[:, :target]                 # never read by any valid frame
        # Time-on-lanes layout: (bs, hop, rows).  Kernel then needs no transposes and
        # emits (F, T) tiles directly (lane-dense stores, no wrapper transpose pass).
        xt = jnp.transpose(x.reshape(bs, rows_pad, hop).astype(compute_dtype), (0, 2, 1))

        if R > 1:
            blocks_per_tile = tile_t // tail
            in_specs = [
                pl.BlockSpec((1, hop, tile_t), lambda b, j: (b, 0, j)),
                pl.BlockSpec((1, hop, tail),
                             lambda b, j: (b, 0, (j + 1) * blocks_per_tile)),
                pl.BlockSpec((f_total, nfft), lambda b, j: (0, 0),
                             pipeline_mode=pl.Buffered(1)),       # resident weight
            ]
            scratch = [pltpu.VMEM((hop, tile_t + tail), compute_dtype),
                       pltpu.VMEM((nfft, tile_t), compute_dtype)]
            args = (xt, xt, w_t)
        else:
            # hop == nfft: no tail / no im2col needed (fixes the old arity mismatch).
            in_specs = [
                pl.BlockSpec((1, hop, tile_t), lambda b, j: (b, 0, j)),
                pl.BlockSpec((f_total, nfft), lambda b, j: (0, 0),
                             pipeline_mode=pl.Buffered(1)),
            ]
            scratch = []
            args = (xt, w_t)
    else:
        # TODO(synk): hop that does not divide nfft falls back to a wrapper-side im2col
        # gather (extra HBM traffic); move it in-kernel (gcd(nfft,hop) rows) if hot.
        R = 1
        tail = 0
        tile_t = _round_up(min(max(tile_frames, 128), _round_up(num_frames, 8)), 128)
        while (tile_t > 128 and
               _estimate_vmem(1, tile_t, 0, nfft, nfft, f_total, half, in_bytes)
               > int(0.85 * budget)):
            tile_t = max(128, _round_up(tile_t // 2, 128))
        num_tiles = _cdiv(num_frames, tile_t)
        t_pad = num_tiles * tile_t
        need = (t_pad - 1) * hop + nfft
        if need > padded_len:
            x = jnp.pad(x, ((0, 0), (0, need - padded_len)))
        idx = jnp.arange(nfft)[:, None] + hop * jnp.arange(t_pad)[None, :]
        frames_t = x[:, idx].astype(compute_dtype)               # (bs, nfft, t_pad)
        in_specs = [
            pl.BlockSpec((1, nfft, tile_t), lambda b, j: (b, 0, j)),
            pl.BlockSpec((f_total, nfft), lambda b, j: (0, 0),
                         pipeline_mode=pl.Buffered(1)),
        ]
        scratch = []
        args = (frames_t, w_t)

    t_out = num_tiles * tile_t
    kernel = _make_kernel(R, tile_t, tail, hop, nfreq, half)

    real, imag = pl.pallas_call(
        kernel,
        out_shape=(jax.ShapeDtypeStruct((bs, nfreq, t_out), jnp.float32),
                   jax.ShapeDtypeStruct((bs, nfreq, t_out), jnp.float32)),
        grid_spec=pltpu.PrefetchScalarGridSpec(
            num_scalar_prefetch=0,
            grid=(bs, num_tiles),
            in_specs=in_specs,
            out_specs=[pl.BlockSpec((1, nfreq, tile_t), lambda b, j: (b, 0, j)),
                       pl.BlockSpec((1, nfreq, tile_t), lambda b, j: (b, 0, j))],
            scratch_shapes=scratch),
        compiler_params=pltpu.CompilerParams(
            dimension_semantics=("parallel", "parallel"),
            vmem_limit_bytes=vmem_limit),
    )(*args)

    if t_out != num_frames:
        # Trim the trailing pad tile.  No transpose: output is already (bs, F, T).
        real = real[:, :, :num_frames]
        imag = imag[:, :, :num_frames]
    return real, imag


def stft_ref(x, nfft, hop_size=None, padding=True, scaled=False):
    """Pure-JAX reference mirroring the PyTorch forward (HIGHEST-precision matmul)."""
    if not hop_size:
        hop_size = nfft // 4
    n = np.arange(nfft)
    hann = 0.5 - 0.5 * np.cos(2.0 * np.pi * n / nfft)
    ohm = np.exp(-2.0 * np.pi * 1j / nfft)
    w = np.power(ohm, np.outer(n, np.arange(nfft // 2 + 1))) * hann[:, None]
    if padding:
        x = jnp.pad(x, ((0, 0), (nfft // 2, nfft // 2)), mode="reflect")
    bs, padded_len = x.shape
    T = (padded_len - nfft) // hop_size + 1
    idx = jnp.arange(T)[:, None] * hop_size + jnp.arange(nfft)[None, :]
    frames = x[:, idx]                                           # (bs, T, nfft)
    hi = jax.lax.Precision.HIGHEST
    real = jnp.einsum("btk,kf->bft", frames, jnp.asarray(w.real, jnp.float32), precision=hi)
    imag = jnp.einsum("btk,kf->bft", frames, jnp.asarray(w.imag, jnp.float32), precision=hi)
    if scaled:
        real = real * 2.0 / nfft
        imag = imag * 2.0 / nfft
    return real, imag


def _check(name, got, want, rtol, atol):
    np.testing.assert_allclose(np.asarray(got[0]), np.asarray(want[0]), rtol=rtol, atol=atol,
                               err_msg=f"{name}: real mismatch")
    np.testing.assert_allclose(np.asarray(got[1]), np.asarray(want[1]), rtol=rtol, atol=atol,
                               err_msg=f"{name}: imag mismatch")


if __name__ == "__main__":
    key = jax.random.PRNGKey(0)
    bs = 2

    # --- A: small f32 config (nfft=16, hop=4): padded-tile path + trim slice ---
    nfft, hop, length = 16, 4, 64
    x = jax.random.normal(key, (bs, length), dtype=jnp.float32)
    out = stft_pallas(x, nfft, hop)
    jax.block_until_ready(out[0]); jax.block_until_ready(out[1])
    _check("A", out, stft_ref(x, nfft, hop), 1e-5, 1e-5)
    T_expected = (length + 2 * (nfft // 2) - nfft) // hop + 1
    assert out[0].shape == (bs, nfft // 2 + 1, T_expected)

    # --- B: scaled variant (2/nfft folded into the weights) ---
    out_s = stft_pallas(x, nfft, hop, scaled=True)
    _check("B", out_s, stft_ref(x, nfft, hop, scaled=True), 1e-5, 1e-5)

    # --- C: exact-tile path (no trailing trim): nfft=128, hop=32, 128 frames ---
    nfft_c, hop_c, len_c = 128, 32, 4064
    xc = jax.random.normal(jax.random.PRNGKey(2), (bs, len_c), dtype=jnp.float32)
    out_c = stft_pallas(xc, nfft_c, hop_c)
    jax.block_until_ready(out_c[0])
    _check("C", out_c, stft_ref(xc, nfft_c, hop_c), 1e-4, 1e-4)
    assert out_c[0].shape == (bs, nfft_c // 2 + 1, 128)

    # --- D: hop == nfft (R == 1 in-kernel path; previously an arity bug) ---
    out_d = stft_pallas(x, 16, 16)
    _check("D", out_d, stft_ref(x, 16, 16), 1e-5, 1e-5)
    assert out_d[0].shape == (bs, 9, 5)

    # --- E: nfft % hop != 0 fallback (wrapper-side frame gather) ---
    out_e = stft_pallas(x, 16, 6)
    _check("E", out_e, stft_ref(x, 16, 6), 1e-5, 1e-5)
    assert out_e[0].shape == (bs, 9, 11)

    # --- F: bf16-input / f32-accumulate fast path (v6e/v7x MXU rate) ---
    nfft_f, hop_f, len_f = 512, 128, 512
    xf = jax.random.normal(jax.random.PRNGKey(1), (bs, len_f), dtype=jnp.float32)
    out_f = stft_pallas(xf, nfft_f, hop_f, compute_dtype=jnp.bfloat16)
    jax.block_until_ready(out_f[0])
    _check("F", out_f, stft_ref(xf, nfft_f, hop_f), 5e-2, 1.0)
    assert out_f[0].shape == (bs, nfft_f // 2 + 1, 5)

    print("KERNEL_OK")
</pallas_src>

<mosaic_0001>
module attributes {stable_mosaic.version = 11 : i64} {
  func.func @kernel(%arg0: i32, %arg1: i32, %arg2: memref<1x4x128xf32, #tpu.memory_space<vmem>>, %arg3: memref<1x4x128xf32, #tpu.memory_space<vmem>>, %arg4: memref<32x16xf32, #tpu.memory_space<vmem>>, %arg5: memref<1x9x128xf32, #tpu.memory_space<vmem>>, %arg6: memref<1x9x128xf32, #tpu.memory_space<vmem>>, %arg7: memref<4x256xf32, #tpu.memory_space<vmem>>, %arg8: memref<16x128xf32, #tpu.memory_space<vmem>>) attributes {dimension_semantics = [#tpu.dimension_semantics<parallel>, #tpu.dimension_semantics<parallel>], iteration_bounds = array<i64: 2, 1>, scalar_prefetch = 0 : i64, scratch_operands = 2 : i64, tpu.core_type = #tpu.core_type<tc>, window_params = [{transform_indices = @transform_0, window_bounds = array<i64: 1, 4, 128>}, {transform_indices = @transform_1, window_bounds = array<i64: 1, 4, 128>}, {pipeline_mode = #tpu.pipeline_mode<synchronous>, transform_indices = @transform_2, window_bounds = array<i64: 32, 16>}, {transform_indices = @transform_3, window_bounds = array<i64: 1, 9, 128>}, {transform_indices = @transform_4, window_bounds = array<i64: 1, 9, 128>}]} {
    %c0 = arith.constant 0 : index
    %c0_0 = arith.constant 0 : index
    %c0_1 = arith.constant 0 : index
    %0 = vector.load %arg2[%c0, %c0_0, %c0_1] : memref<1x4x128xf32, #tpu.memory_space<vmem>>, vector<1x4x128xf32>
    %1 = vector.shape_cast %0 : vector<1x4x128xf32> to vector<4x128xf32>
    %c0_2 = arith.constant 0 : index
    %c0_3 = arith.constant 0 : index
    %2 = vector.load %arg7[%c0_2, %c0_3] : memref<4x256xf32, #tpu.memory_space<vmem>>, vector<4x128xf32>
    tpu.vector_store %arg7[%c0_2, %c0_3], %1 {strides = array<i32>} : memref<4x256xf32, #tpu.memory_space<vmem>>, vector<4x128xf32>,
    %c0_4 = arith.constant 0 : index
    %c0_5 = arith.constant 0 : index
    %c0_6 = arith.constant 0 : index
    %3 = vector.load %arg3[%c0_4, %c0_5, %c0_6] : memref<1x4x128xf32, #tpu.memory_space<vmem>>, vector<1x4x128xf32>
    %4 = vector.shape_cast %3 : vector<1x4x128xf32> to vector<4x128xf32>
    %c0_7 = arith.constant 0 : index
    %c128 = arith.constant 128 : index
    %5 = vector.load %arg7[%c0_7, %c128] : memref<4x256xf32, #tpu.memory_space<vmem>>, vector<4x128xf32>
    tpu.vector_store %arg7[%c0_7, %c128], %4 {strides = array<i32>} : memref<4x256xf32, #tpu.memory_space<vmem>>, vector<4x128xf32>,
    %c0_8 = arith.constant 0 : index
    %c0_9 = arith.constant 0 : index
    %6 = vector.load %arg7[%c0_8, %c0_9] : memref<4x256xf32, #tpu.memory_space<vmem>>, vector<4x256xf32>
    %7 = vector.extract_strided_slice %6 {offsets = [0, 0], sizes = [4, 128], strides = [1, 1]} : vector<4x256xf32> to vector<4x128xf32>
    %c0_10 = arith.constant 0 : index
    %c0_11 = arith.constant 0 : index
    %8 = vector.load %arg8[%c0_10, %c0_11] : memref<16x128xf32, #tpu.memory_space<vmem>>, vector<4x128xf32>
    tpu.vector_store %arg8[%c0_10, %c0_11], %7 {strides = array<i32>} : memref<16x128xf32, #tpu.memory_space<vmem>>, vector<4x128xf32>,
    %c255_i32 = arith.constant 255 : i32
    %9 = tpu.dynamic_rotate %6 by %c255_i32 dim 1 : vector<4x256xf32>, i32 -> vector<4x256xf32>
    %10 = vector.extract_strided_slice %9 {offsets = [0, 0], sizes = [4, 128], strides = [1, 1]} : vector<4x256xf32> to vector<4x128xf32>
    %c4 = arith.constant 4 : index
    %c0_12 = arith.constant 0 : index
    %11 = vector.load %arg8[%c4, %c0_12] : memref<16x128xf32, #tpu.memory_space<vmem>>, vector<4x128xf32>
    tpu.vector_store %arg8[%c4, %c0_12], %10 {strides = array<i32>} : memref<16x128xf32, #tpu.memory_space<vmem>>, vector<4x128xf32>,
    %c254_i32 = arith.constant 254 : i32
    %12 = tpu.dynamic_rotate %6 by %c254_i32 dim 1 : vector<4x256xf32>, i32 -> vector<4x256xf32>
    %13 = vector.extract_strided_slice %12 {offsets = [0, 0], sizes = [4, 128], strides = [1, 1]} : vector<4x256xf32> to vector<4x128xf32>
    %c8 = arith.constant 8 : index
    %c0_13 = arith.constant 0 : index
    %14 = vector.load %arg8[%c8, %c0_13] : memref<16x128xf32, #tpu.memory_space<vmem>>, vector<4x128xf32>
    tpu.vector_store %arg8[%c8, %c0_13], %13 {strides = array<i32>} : memref<16x128xf32, #tpu.memory_space<vmem>>, vector<4x128xf32>,
    %c253_i32 = arith.constant 253 : i32
    %15 = tpu.dynamic_rotate %6 by %c253_i32 dim 1 : vector<4x256xf32>, i32 -> vector<4x256xf32>
    %16 = vector.extract_strided_slice %15 {offsets = [0, 0], sizes = [4, 128], strides = [1, 1]} : vector<4x256xf32> to vector<4x128xf32>
    %c12 = arith.constant 12 : index
    %c0_14 = arith.constant 0 : index
    %17 = vector.load %arg8[%c12, %c0_14] : memref<16x128xf32, #tpu.memory_space<vmem>>, vector<4x128xf32>
    tpu.vector_store %arg8[%c12, %c0_14], %16 {strides = array<i32>} : memref<16x128xf32, #tpu.memory_space<vmem>>, vector<4x128xf32>,
    %c0_15 = arith.constant 0 : index
    %c0_16 = arith.constant 0 : index
    %18 = vector.load %arg4[%c0_15, %c0_16] : memref<32x16xf32, #tpu.memory_space<vmem>>, vector<32x16xf32>
    %c0_17 = arith.constant 0 : index
    %c0_18 = arith.constant 0 : index
    %19 = vector.load %arg8[%c0_17, %c0_18] : memref<16x128xf32, #tpu.memory_space<vmem>>, vector<16x128xf32>
    %cst = arith.constant dense<0.000000e+00> : vector<32x128xf32>
    %20 = tpu.matmul %18, %19, %cst {dimension_numbers = #tpu.dot_dimension_numbers<[1], [0], [0], [1], [0, 0, 1, 1], [], []>} : vector<32x16xf32>, vector<16x128xf32>, vector<32x128xf32> -> vector<32x128xf32>
    %21 = vector.extract_strided_slice %20 {offsets = [0, 0], sizes = [9, 128], strides = [1, 1]} : vector<32x128xf32> to vector<9x128xf32>
    %c0_19 = arith.constant 0 : index
    %c0_20 = arith.constant 0 : index
    %c0_21 = arith.constant 0 : index
    %22 = vector.load %arg5[%c0_19, %c0_20, %c0_21] : memref<1x9x128xf32, #tpu.memory_space<vmem>>, vector<1x9x128xf32>
    %23 = vector.shape_cast %22 : vector<1x9x128xf32> to vector<9x128xf32>
    %24 = vector.shape_cast %21 : vector<9x128xf32> to vector<1x9x128xf32>
    tpu.vector_store %arg5[%c0_19, %c0_20, %c0_21], %24 {strides = array<i32>} : memref<1x9x128xf32, #tpu.memory_space<vmem>>, vector<1x9x128xf32>,
    %25 = vector.extract_strided_slice %20 {offsets = [16, 0], sizes = [9, 128], strides = [1, 1]} : vector<32x128xf32> to vector<9x128xf32>
    %c0_22 = arith.constant 0 : index
    %c0_23 = arith.constant 0 : index
    %c0_24 = arith.constant 0 : index
    %26 = vector.load %arg6[%c0_22, %c0_23, %c0_24] : memref<1x9x128xf32, #tpu.memory_space<vmem>>, vector<1x9x128xf32>
    %27 = vector.shape_cast %26 : vector<1x9x128xf32> to vector<9x128xf32>
    %28 = vector.shape_cast %25 : vector<9x128xf32> to vector<1x9x128xf32>
    tpu.vector_store %arg6[%c0_22, %c0_23, %c0_24], %28 {strides = array<i32>} : memref<1x9x128xf32, #tpu.memory_space<vmem>>, vector<1x9x128xf32>,
    return
  }
  func.func @transform_0(%arg0: i32, %arg1: i32) -> (i32, i32, i32) {
    %c0_i32 = arith.constant 0 : i32
    %c0_i32_0 = arith.constant 0 : i32
    return %arg0, %c0_i32, %arg1 : i32, i32, i32
  }
  func.func @transform_1(%arg0: i32, %arg1: i32) -> (i32, i32, i32) {
    %c1_i32 = arith.constant 1 : i32
    %0 = arith.addi %arg1, %c1_i32 : i32
    %c1_i32_0 = arith.constant 1 : i32
    %1 = arith.muli %0, %c1_i32_0 : i32
    %c0_i32 = arith.constant 0 : i32
    %c0_i32_1 = arith.constant 0 : i32
    return %arg0, %c0_i32, %1 : i32, i32, i32
  }
  func.func @transform_2(%arg0: i32, %arg1: i32) -> (i32, i32) {
    %c0_i32 = arith.constant 0 : i32
    %c0_i32_0 = arith.constant 0 : i32
    %c0_i32_1 = arith.constant 0 : i32
    return %c0_i32, %c0_i32_0 : i32, i32
  }
  func.func @transform_3(%arg0: i32, %arg1: i32) -> (i32, i32, i32) {
    %c0_i32 = arith.constant 0 : i32
    %c0_i32_0 = arith.constant 0 : i32
    return %arg0, %c0_i32, %arg1 : i32, i32, i32
  }
  func.func @transform_4(%arg0: i32, %arg1: i32) -> (i32, i32, i32) {
    %c0_i32 = arith.constant 0 : i32
    %c0_i32_0 = arith.constant 0 : i32
    return %arg0, %c0_i32, %arg1 : i32, i32, i32
  }
}

</mosaic_0001>

<llo_original>
// kernel: tpu_custom_call.1
$region0: #{tpu_custom_call.1}
  #allocation0 [shape = 'u32[]', space=smem, size = 0x4, offset = 0x4, fixed_abs, tag = 'smem constant byte address 0x4 - core index']
  #allocation1 [shape = 'u32[144,128]{1,0:T(1,128)}', space=vmem, size = 0x12000, scoped, tag = 'internal scratch']
  #allocation2 [shape = 'f32[4,256]{1,0:T(4,128)}', space=vmem, size = 0x1000, scoped, tag = 'scratch operand']
  #allocation3 [shape = 'f32[16,128]{1,0:T(8,128)}', space=vmem, size = 0x2000, scoped, tag = 'scratch operand']
  %s0 = inlined_call_operand.hbm [shape: f32[2,4,256], index: 0, kind: input, shape index: {}]
  %s1 = inlined_call_operand.hbm [shape: f32[2,4,256], index: 1, kind: input, shape index: {}]
  %s2 = inlined_call_operand.hbm [shape: f32[32,16], index: 2, kind: input, shape index: {}]
  %s3 = inlined_call_operand.hbm [shape: f32[2,9,128], index: 3, kind: output, shape index: {0}]
  %s4 = inlined_call_operand.hbm [shape: f32[2,9,128], index: 4, kind: output, shape index: {1}]
  %5 = xla_tuple %s3, %s4
  %s6 = sld [smem:[#allocation0]]
  $region65: #{tpu_custom_call.1} parent=0
    _
  %s8 = ssub.s32 1, %s6
  %s9 = scalar_select 0, %s8, %s6
  $region1: #{tpu_custom_call.1} parent=0
    #allocation4 [shape = 'u8[4096]{0}', space=vmem, size = 0x1000, scoped, tag = 'input window, operand 0']
    #allocation5 [shape = 's32[2]{0}', space=sflag, size = 0x8, scoped, tag = 'scoped memory for tpu_custom_call.1']
    #allocation6 [shape = 's32[2]{0}', space=sflag, size = 0x8, scoped, tag = 'scoped memory for tpu_custom_call.1']
    #allocation7 [shape = 'u8[4096]{0}', space=vmem, size = 0x1000, scoped, tag = 'input window, operand 1']
    #allocation8 [shape = 's32[2]{0}', space=sflag, size = 0x8, scoped, tag = 'scoped memory for tpu_custom_call.1']
    #allocation9 [shape = 'u8[16384]{0}', space=vmem, size = 0x4000, scoped, tag = 'input window, operand 2, single buffered']
    #allocation10 [shape = 'u8[16384]{0}', space=vmem, size = 0x4000, scoped, tag = 'output window, operand 0']
    #allocation11 [shape = 'u8[16384]{0}', space=vmem, size = 0x4000, scoped, tag = 'output window, operand 1']
    #allocation12 [shape = 's32[2]{0}', space=sflag, size = 0x8, scoped, tag = 'scoped memory for tpu_custom_call.1']
    %10 = vsyncpa [#allocation5], 0
    %s11 = scalar_lea.sflag [#allocation5], 1
    %12 = vsyncpa %s11, 0
    %13 = vsyncpa [#allocation8], 0
    %s14 = scalar_lea.sflag [#allocation8], 1
    %15 = vsyncpa %s14, 0
    %16 = vsyncpa [#allocation6], 0
    %s17 = scalar_lea.sflag [#allocation6], 1
    %18 = vsyncpa %s17, 0
    %19 = vsyncpa [#allocation12], 0
    %s20 = scalar_lea.sflag [#allocation12], 1
    %21 = vsyncpa %s20, 0
    loop: start=0, step=1, limit=4
    $region2: #{tpu_custom_call.1} parent=1 // loop_pre_header
      _
    $region3: #{tpu_custom_call.1} parent=1 // loop_header
      %s23 = sphi 0, %s27
      %p24 = scmp.ge.s32.totalorder %s23, 4
      %s30 = sphi 0, %s42
      %s31 = sphi 0, %s38
      %s32 = sphi 0, %s30
      %s33 = sphi 0, %s31
      %s34 = sphi 0, %s32
      %s35 = sphi 0, %s33
      %s47 = sphi 0, %s49
      %s50 = sphi 0, %s47
      %s51 = sphi 0, %s50
      %s67 = sphi 0, %s51
      %s77 = sphi 0, %s79
      %s80 = sphi 0, %s77
      %s81 = sphi 0, %s80
      %s97 = sphi 0, %s81
      %s101 = sphi 0, %s101
      %s103 = sphi 0, %s101
      %s104 = sphi 0, %s103
      %s118 = sphi 0, %s104
      %s126 = sphi 0, %s128
      %s129 = sphi 0, %s126
      %s130 = sphi 0, %s129
      %s146 = sphi 0, %s130
      %s154 = sphi 0, %s156
      %s157 = sphi 0, %s154
      %s158 = sphi 0, %s157
      %s174 = sphi 0, %s158
    $region4: #{tpu_custom_call.1} parent=1 // loop_header_branch
      %26 = sbr.rel (%p24) target = $region8
    $region5: #{tpu_custom_call.1} parent=1 // loop_body
      %s28 = ssub.s32 %s23, 1
      %s29 = ssub.s32 %s23, 2
      %s36 = sadd.s32 1, %s31
      %p37 = scmp.ge.s32.totalorder %s36, 1
      %s38 = scalar_select %p37, 0, %s36
      %s39 = sadd.s32 1, %s30
      %s40 = scalar_select %p37, %s39, %s30
      %p41 = scmp.ge.s32.totalorder %s40, 2
      %s42 = scalar_select %p41, 0, %s40
      %s43 = ssub.s32 %s30, %s42
      %s44 = ssub.s32 %s31, %s38
      %s45 = sor.u32 %s43, %s44
      %p46 = scmp.eq.s32.totalorder %s45, 0
      %s48 = sadd.s32 %s47, 1
      %s49 = scalar_select %p46, %s47, %s48
      %p52 = pneg %p46
      %p53 = scmp.eq.s32.totalorder %s23, 1
      %p54 = por %p52, %p53
      %p55 = scmp.ne.s32.totalorder %s47, %s50
      %p56 = scmp.eq.s32.totalorder %s23, 0
      %p57 = por %p55, %p56
      %p58 = scmp.ne.s32.totalorder %s47, %s50
      %p59 = scmp.eq.s32.totalorder %s28, 1
      %p60 = por %p58, %p59
      %p61 = scmp.ne.s32.totalorder %s50, %s51
      %p62 = scmp.eq.s32.totalorder %s28, 0
      %p63 = por %p61, %p62
      %p64 = scmp.ne.s32.totalorder %s50, %s51
      %p65 = scmp.eq.s32.totalorder %s29, 1
      %p66 = por %p64, %p65
      %p68 = scmp.ne.s32.totalorder %s51, %s67
      %p69 = scmp.eq.s32.totalorder %s29, 0
      %p70 = por %p68, %p69
      %s71 = sadd.s32 %s31, 1
      %s72 = sadd.s32 %s38, 1
      %s73 = ssub.s32 %s30, %s42
      %s74 = ssub.s32 %s71, %s72
      %s75 = sor.u32 %s73, %s74
      %p76 = scmp.eq.s32.totalorder %s75, 0
      %s78 = sadd.s32 %s77, 1
      %s79 = scalar_select %p76, %s77, %s78
      %p82 = pneg %p76
      %p83 = scmp.eq.s32.totalorder %s23, 1
      %p84 = por %p82, %p83
      %p85 = scmp.ne.s32.totalorder %s77, %s80
      %p86 = scmp.eq.s32.totalorder %s23, 0
      %p87 = por %p85, %p86
      %p88 = scmp.ne.s32.totalorder %s77, %s80
      %p89 = scmp.eq.s32.totalorder %s28, 1
      %p90 = por %p88, %p89
      %p91 = scmp.ne.s32.totalorder %s80, %s81
      %p92 = scmp.eq.s32.totalorder %s28, 0
      %p93 = por %p91, %p92
      %p94 = scmp.ne.s32.totalorder %s80, %s81
      %p95 = scmp.eq.s32.totalorder %s29, 1
      %p96 = por %p94, %p95
      %p98 = scmp.ne.s32.totalorder %s81, %s97
      %p99 = scmp.eq.s32.totalorder %s29, 0
      %p100 = por %p98, %p99
      %s102 = sadd.s32 %s101, 1
      %p105 = scmp.eq.s32.totalorder %s23, 1
      %p106 = scmp.ne.s32.totalorder %s101, %s103
      %p107 = scmp.eq.s32.totalorder %s23, 0
      %p108 = por %p106, %p107
      %p109 = scmp.ne.s32.totalorder %s101, %s103
      %p110 = scmp.eq.s32.totalorder %s28, 1
      %p111 = por %p109, %p110
      %p112 = scmp.ne.s32.totalorder %s103, %s104
      %p113 = scmp.eq.s32.totalorder %s28, 0
      %p114 = por %p112, %p113
      %p115 = scmp.ne.s32.totalorder %s103, %s104
      %p116 = scmp.eq.s32.totalorder %s29, 1
      %p117 = por %p115, %p116
      %p119 = scmp.ne.s32.totalorder %s104, %s118
      %p120 = scmp.eq.s32.totalorder %s29, 0
      %p121 = por %p119, %p120
      %s122 = ssub.s32 %s30, %s42
      %s123 = ssub.s32 %s31, %s38
      %s124 = sor.u32 %s122, %s123
      %p125 = scmp.eq.s32.totalorder %s124, 0
      %s127 = sadd.s32 %s126, 1
      %s128 = scalar_select %p125, %s126, %s127
      %p131 = pneg %p125
      %p132 = scmp.eq.s32.totalorder %s23, 1
      %p133 = por %p131, %p132
      %p134 = scmp.ne.s32.totalorder %s126, %s129
      %p135 = scmp.eq.s32.totalorder %s23, 0
      %p136 = por %p134, %p135
      %p137 = scmp.ne.s32.totalorder %s126, %s129
      %p138 = scmp.eq.s32.totalorder %s28, 1
      %p139 = por %p137, %p138
      %p140 = scmp.ne.s32.totalorder %s129, %s130
      %p141 = scmp.eq.s32.totalorder %s28, 0
      %p142 = por %p140, %p141
      %p143 = scmp.ne.s32.totalorder %s129, %s130
      %p144 = scmp.eq.s32.totalorder %s29, 1
      %p145 = por %p143, %p144
      %p147 = scmp.ne.s32.totalorder %s130, %s146
      %p148 = scmp.eq.s32.totalorder %s29, 0
      %p149 = por %p147, %p148
      %s150 = ssub.s32 %s30, %s42
      %s151 = ssub.s32 %s31, %s38
      %s152 = sor.u32 %s150, %s151
      %p153 = scmp.eq.s32.totalorder %s152, 0
      %s155 = sadd.s32 %s154, 1
      %s156 = scalar_select %p153, %s154, %s155
      %p159 = pneg %p153
      %p160 = scmp.eq.s32.totalorder %s23, 1
      %p161 = por %p159, %p160
      %p162 = scmp.ne.s32.totalorder %s154, %s157
      %p163 = scmp.eq.s32.totalorder %s23, 0
      %p164 = por %p162, %p163
      %p165 = scmp.ne.s32.totalorder %s154, %s157
      %p166 = scmp.eq.s32.totalorder %s28, 1
      %p167 = por %p165, %p166
      %p168 = scmp.ne.s32.totalorder %s157, %s158
      %p169 = scmp.eq.s32.totalorder %s28, 0
      %p170 = por %p168, %p169
      %p171 = scmp.ne.s32.totalorder %s157, %s158
      %p172 = scmp.eq.s32.totalorder %s29, 1
      %p173 = por %p171, %p172
      %p175 = scmp.ne.s32.totalorder %s158, %s174
      %p176 = scmp.eq.s32.totalorder %s29, 0
      %p177 = por %p175, %p176
      %p178 = scmp.le.s32.totalorder 1, %s23
      %p179 = scmp.lt.s32.totalorder %s23, 3
      %p180 = pnand %p178, %p179
      %p181 = pneg %p180
      // Predicated region
      $region9: #{tpu_custom_call.1} parent=5 // pred_check
        _
      $region10: #{tpu_custom_call.1} parent=5 // pred_check_branch
        %183 = sbr.rel (%p180) target = $region12
      $region11: #{tpu_custom_call.1} parent=5 // pred_region
        %s184 = ssub.s32 %s23, 1
        // Predicated region
        $region13: #{tpu_custom_call.1} parent=11 // pred_check
          %p185 = pneg %p114
        $region14: #{tpu_custom_call.1} parent=11 // pred_check_branch
          %187 = sbr.rel (%p185) target = $region16
        $region15: #{tpu_custom_call.1} parent=11 // pred_region
          %s189 = ssub.s32 512, 512
          %190 = vsyncadd [#allocation8], %s189
          %s191 = sshll.u32 [#allocation9], 4
          %s192 = int_to_ptr.vmem [resolvable:$true] %s191
          %197 = dma.hbm_to_vmem [thread:$0]  %s2, 512, %s192, [#allocation8], 128, 128, 8
        $region16: #{tpu_custom_call.1} parent=11 // pred_fallthru
          _
      $region12: #{tpu_custom_call.1} parent=5 // pred_fallthru
        _
      %p198 = scmp.lt.s32.totalorder %s23, 2
      // Predicated region
      $region17: #{tpu_custom_call.1} parent=5 // pred_check
        %p199 = pneg %p198
      $region18: #{tpu_custom_call.1} parent=5 // pred_check_branch
        %201 = sbr.rel (%p199) target = $region20
      $region19: #{tpu_custom_call.1} parent=5 // pred_region
        // Predicated region
        $region21: #{tpu_custom_call.1} parent=19 // pred_check
          %p202 = pneg %p57
        $region22: #{tpu_custom_call.1} parent=19 // pred_check_branch
          %204 = sbr.rel (%p202) target = $region24
        $region23: #{tpu_custom_call.1} parent=19 // pred_region
          %s205 = sand.u32 %s47, 1
          %s206 = scalar_lea.sflag [#allocation5], %s205
          %s207 = sand.u32 %s47, 1
          %s208 = smul.addr %s207, 4
          %s209 = scalar_lea.vmem [#allocation4], %s208
          %s211 = ssub.s32 64, 64
          %212 = vsyncadd %s206, %s211
          %s213 = smul.addr %s30, 2
          %s214 = sadd.s32 %s31, %s213
          %s215 = smul.addr %s214, 64
          %s216 = scalar_lea.hbm %s0, %s215
          %s218 = sshll.u32 %s209, 4
          %s219 = int_to_ptr.vmem [resolvable:$true] %s218
          %221 = dma.hbm_to_vmem [thread:$0]  %s216, 64, %s219, %s206
        $region24: #{tpu_custom_call.1} parent=19 // pred_fallthru
          _
        // Predicated region
        $region25: #{tpu_custom_call.1} parent=19 // pred_check
          %p222 = pneg %p87
        $region26: #{tpu_custom_call.1} parent=19 // pred_check_branch
          %224 = sbr.rel (%p222) target = $region28
        $region27: #{tpu_custom_call.1} parent=19 // pred_region
          %s225 = sand.u32 %s23, 1
          %s226 = scalar_lea.sflag [#allocation8], %s225
          %s227 = sand.u32 %s77, 1
          %s228 = smul.addr %s227, 4
          %s229 = scalar_lea.vmem [#allocation7], %s228
          %s230 = sadd.s32 %s31, 1
          %s232 = ssub.s32 64, 64
          %233 = vsyncadd %s226, %s232
          %s234 = smul.addr %s30, 2
          %s235 = sadd.s32 %s230, %s234
          %s236 = smul.addr %s235, 64
          %s237 = scalar_lea.hbm %s1, %s236
          %s239 = sshll.u32 %s229, 4
          %s240 = int_to_ptr.vmem [resolvable:$true] %s239
          %242 = dma.hbm_to_vmem [thread:$0]  %s237, 64, %s240, %s226
        $region28: #{tpu_custom_call.1} parent=19 // pred_fallthru
          _
      $region20: #{tpu_custom_call.1} parent=5 // pred_fallthru
        _
      %p243 = scmp.le.s32.totalorder 1, %s23
      %p244 = scmp.lt.s32.totalorder %s23, 3
      %p245 = pnand %p243, %p244
      %p246 = pneg %p245
      // Predicated region
      $region29: #{tpu_custom_call.1} parent=5 // pred_check
        _
      $region30: #{tpu_custom_call.1} parent=5 // pred_check_branch
        %248 = sbr.rel (%p245) target = $region32
      $region31: #{tpu_custom_call.1} parent=5 // pred_region
        %s249 = ssub.s32 %s23, 1
        %s250 = sand.u32 %s50, 1
        %s251 = scalar_lea.sflag [#allocation5], %s250
        %s252 = sand.u32 %s50, 1
        %s253 = smul.addr %s252, 4
        %s254 = scalar_lea.vmem [#allocation4], %s253
        // Predicated region
        $region33: #{tpu_custom_call.1} parent=31 // pred_check
          %p255 = pneg %p63
        $region34: #{tpu_custom_call.1} parent=31 // pred_check_branch
          %257 = sbr.rel (%p255) target = $region36
        $region35: #{tpu_custom_call.1} parent=31 // pred_region
          %258 = dma.done %s251, 64
        $region36: #{tpu_custom_call.1} parent=31 // pred_fallthru
          _
        %s259 = sand.u32 %s28, 1
        %s260 = scalar_lea.sflag [#allocation8], %s259
        %s261 = sand.u32 %s80, 1
        %s262 = smul.addr %s261, 4
        %s263 = scalar_lea.vmem [#allocation7], %s262
        // Predicated region
        $region37: #{tpu_custom_call.1} parent=31 // pred_check
          %p264 = pneg %p93
        $region38: #{tpu_custom_call.1} parent=31 // pred_check_branch
          %266 = sbr.rel (%p264) target = $region40
        $region39: #{tpu_custom_call.1} parent=31 // pred_region
          %267 = dma.done %s260, 64
        $region40: #{tpu_custom_call.1} parent=31 // pred_fallthru
          _
        // Predicated region
        $region41: #{tpu_custom_call.1} parent=31 // pred_check
          %p268 = pneg %p114
        $region42: #{tpu_custom_call.1} parent=31 // pred_check_branch
          %270 = sbr.rel (%p268) target = $region44
        $region43: #{tpu_custom_call.1} parent=31 // pred_region
          %271 = dma.done [#allocation8], 512
        $region44: #{tpu_custom_call.1} parent=31 // pred_fallthru
          _
        %s272 = sand.u32 %s50, 1
        %s273 = scalar_lea.sflag [#allocation5], %s272
        %s274 = sand.u32 %s50, 1
        %s275 = smul.addr %s274, 4
        %s276 = scalar_lea.vmem [#allocation4], %s275
        %p277 = pneg %p63
        %p278 = pneg %p60
        %s279 = sand.u32 %s28, 1
        %s280 = scalar_lea.sflag [#allocation8], %s279
        %s281 = sand.u32 %s80, 1
        %s282 = smul.addr %s281, 4
        %s283 = scalar_lea.vmem [#allocation7], %s282
        %p284 = pneg %p93
        %p285 = pneg %p90
        %p286 = pneg %p114
        %p287 = pneg %p111
        %p288 = pneg %p142
        %p289 = pneg %p139
        %s290 = sand.u32 %s129, 1
        %s291 = scalar_lea.sflag [#allocation6], %s290
        %s292 = sand.u32 %s129, 1
        %s293 = smul.addr %s292, 16
        %s294 = scalar_lea.vmem [#allocation10], %s293
        %p295 = pneg %p170
        %p296 = pneg %p167
        %s297 = sand.u32 %s157, 1
        %s298 = scalar_lea.sflag [#allocation12], %s297
        %s299 = sand.u32 %s157, 1
        %s300 = smul.addr %s299, 16
        %s301 = scalar_lea.vmem [#allocation11], %s300
        %s302 = sadd.s32 %s33, 1
        %v303 = vld [vmem:[%s254] sm:$0xf]
        %304 = vst [vmem:[#allocation2] sm:$0xf] %v303
        %v305 = vld [vmem:[%s263] sm:$0xf]
        %306 = vst [vmem:[#allocation2 + $0x4] sm:$0xf] %v305
        %v307 = vld [vmem:[#allocation2] sm:$0xff]
        %308 = vst [vmem:[#allocation3] sm:$0xf] %v307
        %v310 = vcombine.high %v307, %v307
        %312 = vrot.lane.b32.xlu0 %v307, 127
        %v313 = vpop.permute.xlu0 %312
        %314 = vrot.lane.b32.xlu0 %v310, 127
        %v315 = vpop.permute.xlu0 %314
        %v316 = vlaneseq
        %v317 = vand.u32 %v316, 127
        %vm318 = vcmp.lt.s32.totalorder %v317, 127
        %v319 = vsel %vm318, %v313, %v315
        %320 = vst [vmem:[#allocation3 + $0x4] sm:$0xf] %v319
        %321 = vrot.lane.b32.xlu0 %v307, 126
        %v322 = vpop.permute.xlu0 %321
        %323 = vrot.lane.b32.xlu0 %v310, 126
        %v324 = vpop.permute.xlu0 %323
        %vm325 = vcmp.lt.s32.totalorder %v317, 126
        %v326 = vsel %vm325, %v322, %v324
        %327 = vst [vmem:[#allocation3 + $0x8] sm:$0xf] %v326
        %328 = vrot.lane.b32.xlu0 %v307, 125
        %v329 = vpop.permute.xlu0 %328
        %330 = vrot.lane.b32.xlu0 %v310, 125
        %v331 = vpop.permute.xlu0 %330
        %vm332 = vcmp.lt.s32.totalorder %v317, 125
        %v333 = vsel %vm332, %v329, %v331
        %334 = vst [vmem:[#allocation3 + $0xc] sm:$0xf] %v333
        %v335 = vld [vmem:[#allocation9] sm:$0xff]
        %v336 = vld [vmem:[#allocation9 + $0x8] sm:$0xff]
        %v337 = vld [vmem:[#allocation9 + $0x10] sm:$0xff]
        %v338 = vld [vmem:[#allocation9 + $0x18] sm:$0xff]
        %v339 = vld [vmem:[#allocation3] sm:$0xff]
        %v340 = vld [vmem:[#allocation3 + $0x8] sm:$0xff]
        %vm341 = vcmask 130048
        %v343 = vsel %vm341, %v335, 0
        %v346 = vsel %vm341, %v336, 0
        %v349 = vsel %vm341, %v337, 0
        %v352 = vsel %vm341, %v338, 0
        %354 = vmatprep.subr.mxu0 0.0
        %355 = vmatpush1.msra.mxu0 %v339
        %356 = vmatprep.subr.mxu0 0.0
        %357 = vmatpush1.msra.mxu0 %v340
        %358 = vmatprep.subr.mxu0 0.0
        %359 = vmatpush1.msra.mxu0 0.0
        %360 = vmatprep.subr.mxu0 0.0
        %361 = vmatpush1.msra.mxu0 0.0
        %362 = vmatprep.subr.mxu0 0.0
        %363 = vmatpush1.msra.mxu0 0.0
        %364 = vmatprep.subr.mxu0 0.0
        %365 = vmatpush1.msra.mxu0 0.0
        %366 = vmatprep.subr.mxu0 0.0
        %367 = vmatpush1.msra.mxu0 0.0
        %368 = vmatprep.subr.mxu0 0.0
        %369 = vmatpush1.msra.mxu0 0.0
        %370 = vmatprep.subr.mxu0 0.0
        %371 = vmatpush1.msra.mxu0 0.0
        %372 = vmatprep.subr.mxu0 0.0
        %373 = vmatpush1.msra.mxu0 0.0
        %374 = vmatprep.subr.mxu0 0.0
        %375 = vmatpush1.msra.mxu0 0.0
        %376 = vmatprep.subr.mxu0 0.0
        %377 = vmatpush1.msra.mxu0 0.0
        %378 = vmatprep.subr.mxu0 0.0
        %379 = vmatpush1.msra.mxu0 0.0
        %380 = vmatprep.subr.mxu0 0.0
        %381 = vmatpush1.msra.mxu0 0.0
        %382 = vmatprep.subr.mxu0 0.0
        %383 = vmatpush1.msra.mxu0 0.0
        %384 = vmatprep.subr.mxu0 0.0
        %385 = vmatpush1.msra.mxu0 0.0
        %386 = vmatprep.subr.mxu0 0.0
        %387 = vmatpush1.msra.mxu0 0.0
        %388 = vmatprep.subr.mxu0 0.0
        %389 = vmatpush1.msra.mxu0 0.0
        %390 = vmatprep.subr.mxu0 0.0
        %391 = vmatpush1.msra.mxu0 0.0
        %392 = vmatprep.subr.mxu0 0.0
        %393 = vmatpush1.msra.mxu0 0.0
        %394 = vmatprep.subr.mxu0 0.0
        %395 = vmatpush1.msra.mxu0 0.0
        %396 = vmatprep.subr.mxu0 0.0
        %397 = vmatpush1.msra.mxu0 0.0
        %398 = vmatprep.subr.mxu0 0.0
        %399 = vmatpush1.msra.mxu0 0.0
        %400 = vmatprep.subr.mxu0 0.0
        %401 = vmatpush1.msra.mxu0 0.0
        %402 = vmatprep.subr.mxu0 0.0
        %403 = vmatpush1.msra.mxu0 0.0
        %404 = vmatprep.subr.mxu0 0.0
        %405 = vmatpush1.msra.mxu0 0.0
        %406 = vmatprep.subr.mxu0 0.0
        %407 = vmatpush1.msra.mxu0 0.0
        %408 = vmatprep.subr.mxu0 0.0
        %409 = vmatpush1.msra.mxu0 0.0
        %410 = vmatprep.subr.mxu0 0.0
        %411 = vmatpush1.msra.mxu0 0.0
        %412 = vmatprep.subr.mxu0 0.0
        %413 = vmatpush1.msra.mxu0 0.0
        %414 = vmatprep.subr.mxu0 0.0
        %415 = vmatpush1.msra.mxu0 0.0
        %416 = vmatprep.subr.mxu0 0.0
        %417 = vmatpush1.msra.mxu0 0.0
        %418 = vmatprep.mubr.f32.mxu0 0.0
        %419 = vmatmul.mubr.f32.gmra.mrb[0].mxu0 %v343
        %v420 = vpop.f32.mrb[0].mxu0
        %v421 = vadd.f32 0.0, %v420
        %v422 = vpop.f32.mrb[0].mxu0
        %423 = vmatprep.mubr.f32.mxu0 0.0
        %424 = vmatmul.mubr.f32.gmra.mrb[0].mxu0 %v346
        %v425 = vpop.f32.mrb[0].mxu0
        %v426 = vadd.f32 0.0, %v425
        %v427 = vpop.f32.mrb[0].mxu0
        %428 = vmatprep.mubr.f32.mxu0 0.0
        %429 = vmatmul.mubr.f32.gmra.mrb[0].mxu0 %v349
        %v430 = vpop.f32.mrb[0].mxu0
        %v431 = vadd.f32 0.0, %v430
        %v432 = vpop.f32.mrb[0].mxu0
        %433 = vmatprep.mubr.f32.mxu0 0.0
        %434 = vmatmul.mubr.f32.gmra.mrb[0].mxu0 %v352
        %v435 = vpop.f32.mrb[0].mxu0
        %v436 = vadd.f32 0.0, %v435
        %v437 = vpop.f32.mrb[0].mxu0
        %438 = vdwg.mxu0
        %439 = vst [vmem:[%s294] sm:$0xff] %v421
        %440 = vst [vmem:[%s294 + $0x8] sm:$0x1] %v426
        %441 = vst [vmem:[%s301] sm:$0xff] %v431
        %442 = vst [vmem:[%s301 + $0x8] sm:$0x1] %v436
        %s443 = sand.u32 %s129, 1
        %s444 = scalar_lea.sflag [#allocation6], %s443
        %s445 = sand.u32 %s129, 1
        %s446 = smul.addr %s445, 16
        %s447 = scalar_lea.vmem [#allocation10], %s446
        %s448 = sand.u32 %s157, 1
        %s449 = scalar_lea.sflag [#allocation12], %s448
        %s450 = sand.u32 %s157, 1
        %s451 = smul.addr %s450, 16
        %s452 = scalar_lea.vmem [#allocation11], %s451
        // Predicated region
        $region45: #{tpu_custom_call.1} parent=31 // pred_check
          %p453 = pneg %p139
        $region46: #{tpu_custom_call.1} parent=31 // pred_check_branch
          %455 = sbr.rel (%p453) target = $region48
        $region47: #{tpu_custom_call.1} parent=31 // pred_region
          %s457 = ssub.s32 256, 256
          %458 = vsyncadd %s444, %s457
          %s459 = smul.addr %s32, 2
          %s460 = sadd.s32 %s33, %s459
          %s461 = smul.addr %s460, 128
          %s462 = scalar_lea.hbm %s3, %s461
          %s463 = sshll.u32 %s447, 4
          %s464 = int_to_ptr.vmem [resolvable:$true] %s463
          %469 = dma.vmem_to_hbm [thread:$0]  %s464, 256, %s462, %s444, 128, 128, 8
        $region48: #{tpu_custom_call.1} parent=31 // pred_fallthru
          _
        // Predicated region
        $region49: #{tpu_custom_call.1} parent=31 // pred_check
          %p470 = pneg %p167
        $region50: #{tpu_custom_call.1} parent=31 // pred_check_branch
          %472 = sbr.rel (%p470) target = $region52
        $region51: #{tpu_custom_call.1} parent=31 // pred_region
          %s474 = ssub.s32 256, 256
          %475 = vsyncadd %s449, %s474
          %s476 = smul.addr %s32, 2
          %s477 = sadd.s32 %s33, %s476
          %s478 = smul.addr %s477, 128
          %s479 = scalar_lea.hbm %s4, %s478
          %s480 = sshll.u32 %s452, 4
          %s481 = int_to_ptr.vmem [resolvable:$true] %s480
          %486 = dma.vmem_to_hbm [thread:$0]  %s481, 256, %s479, %s449, 128, 128, 8
        $region52: #{tpu_custom_call.1} parent=31 // pred_fallthru
          _
      $region32: #{tpu_custom_call.1} parent=5 // pred_fallthru
        _
      %p487 = scmp.le.s32.totalorder 2, %s23
      // Predicated region
      $region53: #{tpu_custom_call.1} parent=5 // pred_check
        %p488 = pneg %p487
      $region54: #{tpu_custom_call.1} parent=5 // pred_check_branch
        %490 = sbr.rel (%p488) target = $region56
      $region55: #{tpu_custom_call.1} parent=5 // pred_region
        %s491 = ssub.s32 %s23, 2
        // Predicated region
        $region57: #{tpu_custom_call.1} parent=55 // pred_check
          %p492 = pneg %p145
        $region58: #{tpu_custom_call.1} parent=55 // pred_check_branch
          %494 = sbr.rel (%p492) target = $region60
        $region59: #{tpu_custom_call.1} parent=55 // pred_region
          %s495 = sand.u32 %s130, 1
          %s496 = scalar_lea.sflag [#allocation6], %s495
          %s497 = sand.u32 %s130, 1
          %s498 = smul.addr %s497, 16
          %s499 = scalar_lea.vmem [#allocation10], %s498
          %500 = dma.done %s496, 256
        $region60: #{tpu_custom_call.1} parent=55 // pred_fallthru
          _
        // Predicated region
        $region61: #{tpu_custom_call.1} parent=55 // pred_check
          %p501 = pneg %p173
        $region62: #{tpu_custom_call.1} parent=55 // pred_check_branch
          %503 = sbr.rel (%p501) target = $region64
        $region63: #{tpu_custom_call.1} parent=55 // pred_region
          %s504 = sand.u32 %s158, 1
          %s505 = scalar_lea.sflag [#allocation12], %s504
          %s506 = sand.u32 %s158, 1
          %s507 = smul.addr %s506, 16
          %s508 = scalar_lea.vmem [#allocation11], %s507
          %509 = dma.done %s505, 256
        $region64: #{tpu_custom_call.1} parent=55 // pred_fallthru
          _
      $region56: #{tpu_custom_call.1} parent=5 // pred_fallthru
        _
    $region6: #{tpu_custom_call.1} parent=1 // loop_footer
      %s27 = sadd.s32 1, %s23
    $region7: #{tpu_custom_call.1} parent=1 // loop_footer_branch
      %22 = sbr.rel target = $region3
    $region8: #{tpu_custom_call.1} parent=1 // loop_exit
      _
    %510 = vsyncpa [#allocation5], 1
    %s511 = scalar_lea.sflag [#allocation5], 1
    %512 = vsyncpa %s511, 1
    %513 = vsyncpa [#allocation8], 1
    %s514 = scalar_lea.sflag [#allocation8], 1
    %515 = vsyncpa %s514, 1
    %516 = vsyncpa [#allocation6], 1
    %s517 = scalar_lea.sflag [#allocation6], 1
    %518 = vsyncpa %s517, 1
    %519 = vsyncpa [#allocation12], 1
    %s520 = scalar_lea.sflag [#allocation12], 1
    %521 = vsyncpa %s520, 1

</llo_original>
